<compile_context>
chip_gen: v6e
topology: v6e:2x2x1
jax: 0.10.0
libtpu: 0.0.40
codegen_flags: <defaults>
</compile_context>

<pallas_src>
import functools

import jax
import jax.numpy as jnp
from jax.experimental import pallas as pl
from jax.experimental.pallas import tpu as pltpu


def mixnet_kernel(n_agents, s_ref, fvw_ref, fvb_ref, hw_ref, hb_ref, out_ref):
    # s_ref:   (tile_b, state_shape)  f32  (cast to bf16 in-kernel, free on VPU)
    # fvw_ref: (state_shape, hidden)  bf16      fvb_ref: (1, hidden)  f32
    # hw_ref:  (hidden, A+1)          bf16      hb_ref:  (1, A+1)     f32
    # out_ref: (tile_b, A+1)          f32   (cols [0, A): |w|, col A: b)
    s = s_ref[...].astype(fvw_ref.dtype)
    x = jnp.dot(s, fvw_ref[...], preferred_element_type=jnp.float32)
    h = jnp.maximum(x + fvb_ref[...], 0.0)                    # F.relu, f32
    y = jnp.dot(h.astype(hw_ref.dtype), hw_ref[...],
                preferred_element_type=jnp.float32) + hb_ref[...]
    # abs() only on the w columns (first n_agents lanes), b column untouched.
    col = jax.lax.broadcasted_iota(jnp.int32, y.shape, dimension=1)
    out_ref[...] = jnp.where(col < n_agents, jnp.abs(y), y)


def _vmem_budget_and_limit():
    """(budget, scoped limit) per TPU generation; conservative fallback."""
    cap = None
    try:
        info = pltpu.get_tpu_info()
        cap = getattr(info, "vmem_capacity_bytes", None)
    except Exception:
        cap = None
    if cap is not None and cap >= 128 * 1024 * 1024:     # v5e / v6e
        return 48 * 1024 * 1024, 64 * 1024 * 1024
    return 20 * 1024 * 1024, 32 * 1024 * 1024            # v7x (64 MiB physical)


def _choose_tile_b(B, state_shape, hidden, n_out, *, align=8, target_rows=1024,
                   vmem_budget_bytes=20 * 1024 * 1024):
    """Pick a batch tile: multiple of `align`, pipelined, VMEM-honest."""
    lane = 128
    s_pad = pl.cdiv(state_shape, lane) * lane
    h_pad = pl.cdiv(hidden, lane) * lane
    o_pad = pl.cdiv(n_out, lane) * lane
    # Fixed VMEM: weight tensors (count 2 buffers to be safe) + biases.
    fixed = (2 * (state_shape * h_pad + hidden * o_pad) * 2    # bf16 weights
             + 2 * (h_pad + o_pad) * 4)                        # f32 biases
    # Per-row VMEM: double-buffered f32 states + f32 fused output tiles
    # (lane-padded), plus the f32 x/h intermediate and its bf16 cast copy.
    per_row = (2 * s_pad * 4
               + 2 * o_pad * 4
               + h_pad * 4
               + h_pad * 2)
    avail = max(per_row, vmem_budget_bytes - fixed)
    cap = max(align, (avail // per_row) // align * align)
    tile = min(target_rows, cap)
    # >= 4 grid steps when batch allows: >= 2 steps per TensorCore on v7x when
    # the "parallel" batch axis is sharded across its 2 cores, and DMA/compute
    # overlap everywhere.  Fall back to >= 2 steps for smaller batches.
    if B >= 4 * align:
        tile = min(tile, max(align, (B // 4) // align * align))
    elif B >= 2 * align:
        tile = min(tile, max(align, (B // 2) // align * align))
    # Never exceed the (rounded-up) batch.
    tile = min(tile, max(align, pl.cdiv(B, align) * align))
    tile = max(align, (tile // align) * align)
    # Prefer a tile that divides B (avoids a ragged last block); Pallas clips
    # the last block correctly either way, this is just tidier.
    for cand in range(tile, align - 1, -align):
        if B % cand == 0:
            return cand
    return tile


def prepare_params(params):
    """One-time weight prep: fuse [w_v | b_v] and cast matmul weights to bf16."""
    return dict(
        fvw=params["fvw"].astype(jnp.bfloat16),
        fvb=params["fvb"].astype(jnp.float32),
        head_w=jnp.concatenate([params["wvw"], params["bvw"]],
                               axis=1).astype(jnp.bfloat16),
        head_b=jnp.concatenate([params["wvb"], params["bvb"]],
                               axis=1).astype(jnp.float32),
    )


def mixnet_forward(states, prepared, *, tile_b=None):
    """states: (B, n_agents, num_state) f32.  `prepared` from prepare_params.

    Returns (w, b) with shapes (B, n_agents, 1) and (B, 1, 1), like PyTorch.
    """
    B, A, S = states.shape
    state_shape = A * S
    hidden = prepared["fvw"].shape[1]
    n_out = A + 1

    # torch.cat([states[:, j, :] for j in range(A)], dim=-1) == reshape(B, A*S).
    # Stream f32 states directly; the bf16 cast happens in-kernel (saves a full
    # HBM read+write pass over the dominant stream).
    states_flat = states.reshape(B, state_shape)

    vmem_budget, vmem_limit = _vmem_budget_and_limit()
    if tile_b is None:
        tile_b = _choose_tile_b(B, state_shape, hidden, n_out,
                                vmem_budget_bytes=vmem_budget)
    else:
        tile_b = max(8, (tile_b // 8) * 8)   # f32 input stream -> 8-row sublane align

    # No jnp.pad: Pallas clips the ragged last block (masked writeback).
    num_tiles = pl.cdiv(B, tile_b)
    grid = (num_tiles,)

    full = lambda shape: pl.BlockSpec(shape, lambda i: (0, 0))

    flops = 2 * B * (state_shape * hidden + hidden * n_out)
    bytes_accessed = (B * state_shape * 4                          # f32 states
                      + (state_shape * hidden + hidden * n_out) * 2  # bf16 weights
                      + (hidden + n_out) * 4                        # f32 biases
                      + B * n_out * 4)                              # f32 fused output
    cost = pl.CostEstimate(flops=flops, transcendentals=0,
                           bytes_accessed=bytes_accessed)

    # Note: deliberately no 128-lane padding of the fused output (would ~25x
    # the output HBM writes).  If the masked store ever binds, emit the output
    # transposed (n_out, tile_b) instead and transpose in the wrapper.
    # TODO(synk): if the compiled VMEM report shows 2 buffers for the constant
    # weight inputs, add pipeline_mode=pl.Buffered(1) on fvw/head_w specs.
    out = pl.pallas_call(
        functools.partial(mixnet_kernel, A),
        out_shape=jax.ShapeDtypeStruct((B, n_out), jnp.float32),
        grid_spec=pltpu.PrefetchScalarGridSpec(
            num_scalar_prefetch=0,
            grid=grid,
            in_specs=[
                pl.BlockSpec((tile_b, state_shape), lambda i: (i, 0)),  # states
                full((state_shape, hidden)),                            # f_v.W^T (bf16)
                full((1, hidden)),                                      # f_v.b
                full((hidden, n_out)),                                  # [w_v|b_v].W^T (bf16)
                full((1, n_out)),                                       # [w_v|b_v].b
            ],
            out_specs=pl.BlockSpec((tile_b, n_out), lambda i: (i, 0)),
        ),
        compiler_params=pltpu.CompilerParams(
            dimension_semantics=("parallel",),
            vmem_limit_bytes=vmem_limit),
        cost_estimate=cost,
    )(states_flat, prepared["fvw"], prepared["fvb"],
      prepared["head_w"], prepared["head_b"])

    w = out[:, :A].reshape(B, A, 1)      # abs already applied in-kernel
    b = out[:, A:A + 1].reshape(B, 1, 1)
    return w, b


def init_params(key, num_state, num_agent, num_hidden):
    """Deterministic Linear-style init. Weights stored as (in, out)."""
    state_shape = num_state * num_agent
    ks = jax.random.split(key, 6)

    def lin(kw, kb, fan_in, fan_out):
        bound = 1.0 / jnp.sqrt(fan_in)
        w = jax.random.uniform(kw, (fan_in, fan_out), jnp.float32, -bound, bound)
        b = jax.random.uniform(kb, (1, fan_out), jnp.float32, -bound, bound)
        return w, b

    fvw, fvb = lin(ks[0], ks[1], state_shape, num_hidden)
    wvw, wvb = lin(ks[2], ks[3], num_hidden, num_agent)
    bvw, bvb = lin(ks[4], ks[5], num_hidden, 1)
    return dict(fvw=fvw, fvb=fvb, wvw=wvw, wvb=wvb, bvw=bvw, bvb=bvb)


def mixnet_reference(states, params):
    """f32 reference matching the PyTorch module."""
    B, A, S = states.shape
    x = states.reshape(B, A * S) @ params["fvw"] + params["fvb"]
    h = jnp.maximum(x, 0.0)
    w = jnp.abs(h @ params["wvw"] + params["wvb"]).reshape(B, A, 1)
    b = (h @ params["bvw"] + params["bvb"]).reshape(B, 1, 1)
    return w, b


if __name__ == "__main__":
    key = jax.random.PRNGKey(0)
    k_param, k_state = jax.random.split(key)

    batch, num_agent, num_state, num_hidden = 8, 4, 16, 32
    params = init_params(k_param, num_state, num_agent, num_hidden)
    prepared = prepare_params(params)
    states = jax.random.normal(k_state, (batch, num_agent, num_state), jnp.float32)

    w, b = mixnet_forward(states, prepared)
    jax.block_until_ready((w, b))

    w_ref, b_ref = mixnet_reference(states, params)
    assert w.shape == (batch, num_agent, 1) and b.shape == (batch, 1, 1)
    # Matmul inputs are bf16 (f32 accumulation) -> relaxed tolerance vs f32 ref.
    assert jnp.allclose(w, w_ref, atol=5e-2, rtol=5e-2)
    assert jnp.allclose(b, b_ref, atol=5e-2, rtol=5e-2)

    print("KERNEL_OK")
</pallas_src>

<mosaic_0001>
module attributes {stable_mosaic.version = 11 : i64} {
  func.func @mixnet_kernel(%arg0: i32, %arg1: memref<8x64xf32, #tpu.memory_space<vmem>>, %arg2: memref<64x32xbf16, #tpu.memory_space<vmem>>, %arg3: memref<1x32xf32, #tpu.memory_space<vmem>>, %arg4: memref<32x5xbf16, #tpu.memory_space<vmem>>, %arg5: memref<1x5xf32, #tpu.memory_space<vmem>>, %arg6: memref<8x5xf32, #tpu.memory_space<vmem>>) attributes {dimension_semantics = [#tpu.dimension_semantics<parallel>], iteration_bounds = array<i64: 1>, scalar_prefetch = 0 : i64, scratch_operands = 0 : i64, tpu.core_type = #tpu.core_type<tc>, window_params = [{transform_indices = @transform_0, window_bounds = array<i64: 8, 64>}, {pipeline_mode = #tpu.pipeline_mode<synchronous>, transform_indices = @transform_1, window_bounds = array<i64: 64, 32>}, {pipeline_mode = #tpu.pipeline_mode<synchronous>, transform_indices = @transform_2, window_bounds = array<i64: 1, 32>}, {pipeline_mode = #tpu.pipeline_mode<synchronous>, transform_indices = @transform_3, window_bounds = array<i64: 32, 5>}, {pipeline_mode = #tpu.pipeline_mode<synchronous>, transform_indices = @transform_4, window_bounds = array<i64: 1, 5>}, {transform_indices = @transform_5, window_bounds = array<i64: 8, 5>}]} {
    %c0 = arith.constant 0 : index
    %c0_0 = arith.constant 0 : index
    %0 = vector.load %arg1[%c0, %c0_0] : memref<8x64xf32, #tpu.memory_space<vmem>>, vector<8x64xf32>
    %1 = arith.truncf %0 : vector<8x64xf32> to vector<8x64xbf16>
    %c0_1 = arith.constant 0 : index
    %c0_2 = arith.constant 0 : index
    %2 = vector.load %arg2[%c0_1, %c0_2] : memref<64x32xbf16, #tpu.memory_space<vmem>>, vector<64x32xbf16>
    %cst = arith.constant dense<0.000000e+00> : vector<8x32xf32>
    %3 = tpu.matmul %1, %2, %cst {dimension_numbers = #tpu.dot_dimension_numbers<[1], [0], [0], [1], [0, 0, 1, 1], [], []>} : vector<8x64xbf16>, vector<64x32xbf16>, vector<8x32xf32> -> vector<8x32xf32>
    %c0_3 = arith.constant 0 : index
    %c0_4 = arith.constant 0 : index
    %4 = vector.load %arg3[%c0_3, %c0_4] : memref<1x32xf32, #tpu.memory_space<vmem>>, vector<1x32xf32>
    %5 = vector.broadcast %4 : vector<1x32xf32> to vector<8x32xf32>
    %6 = arith.addf %3, %5 : vector<8x32xf32>
    %cst_5 = arith.constant 0.000000e+00 : f32
    %7 = vector.broadcast %cst_5 : f32 to vector<8x32xf32>
    %8 = arith.maximumf %6, %7 : vector<8x32xf32>
    %9 = arith.truncf %8 : vector<8x32xf32> to vector<8x32xbf16>
    %c0_6 = arith.constant 0 : index
    %c0_7 = arith.constant 0 : index
    %10 = vector.load %arg4[%c0_6, %c0_7] : memref<32x5xbf16, #tpu.memory_space<vmem>>, vector<32x5xbf16>
    %cst_8 = arith.constant dense<0.000000e+00> : vector<8x5xf32>
    %11 = tpu.matmul %9, %10, %cst_8 {dimension_numbers = #tpu.dot_dimension_numbers<[1], [0], [0], [1], [0, 0, 1, 1], [], []>} : vector<8x32xbf16>, vector<32x5xbf16>, vector<8x5xf32> -> vector<8x5xf32>
    %c0_9 = arith.constant 0 : index
    %c0_10 = arith.constant 0 : index
    %12 = vector.load %arg5[%c0_9, %c0_10] : memref<1x5xf32, #tpu.memory_space<vmem>>, vector<1x5xf32>
    %13 = vector.broadcast %12 : vector<1x5xf32> to vector<8x5xf32>
    %14 = arith.addf %11, %13 : vector<8x5xf32>
    %15 = tpu.iota {dimensions = array<i32: 1>} : vector<8x5xi32>
    %c4_i32 = arith.constant 4 : i32
    %16 = vector.broadcast %c4_i32 : i32 to vector<8x5xi32>
    %17 = arith.cmpi slt, %15, %16 : vector<8x5xi32>
    %18 = math.absf %14 : vector<8x5xf32>
    %19 = arith.select %17, %18, %14 : vector<8x5xi1>, vector<8x5xf32>
    %c0_11 = arith.constant 0 : index
    %c0_12 = arith.constant 0 : index
    %20 = vector.load %arg6[%c0_11, %c0_12] : memref<8x5xf32, #tpu.memory_space<vmem>>, vector<8x5xf32>
    tpu.vector_store %arg6[%c0_11, %c0_12], %19 {strides = array<i32>} : memref<8x5xf32, #tpu.memory_space<vmem>>, vector<8x5xf32>,
    return
  }
  func.func @transform_0(%arg0: i32) -> (i32, i32) {
    %c0_i32 = arith.constant 0 : i32
    %c0_i32_0 = arith.constant 0 : i32
    return %arg0, %c0_i32 : i32, i32
  }
  func.func @transform_1(%arg0: i32) -> (i32, i32) {
    %c0_i32 = arith.constant 0 : i32
    %c0_i32_0 = arith.constant 0 : i32
    %c0_i32_1 = arith.constant 0 : i32
    return %c0_i32, %c0_i32_0 : i32, i32
  }
  func.func @transform_2(%arg0: i32) -> (i32, i32) {
    %c0_i32 = arith.constant 0 : i32
    %c0_i32_0 = arith.constant 0 : i32
    %c0_i32_1 = arith.constant 0 : i32
    return %c0_i32, %c0_i32_0 : i32, i32
  }
  func.func @transform_3(%arg0: i32) -> (i32, i32) {
    %c0_i32 = arith.constant 0 : i32
    %c0_i32_0 = arith.constant 0 : i32
    %c0_i32_1 = arith.constant 0 : i32
    return %c0_i32, %c0_i32_0 : i32, i32
  }
  func.func @transform_4(%arg0: i32) -> (i32, i32) {
    %c0_i32 = arith.constant 0 : i32
    %c0_i32_0 = arith.constant 0 : i32
    %c0_i32_1 = arith.constant 0 : i32
    return %c0_i32, %c0_i32_0 : i32, i32
  }
  func.func @transform_5(%arg0: i32) -> (i32, i32) {
    %c0_i32 = arith.constant 0 : i32
    %c0_i32_0 = arith.constant 0 : i32
    return %arg0, %c0_i32 : i32, i32
  }
}

</mosaic_0001>

<llo_original>
// kernel: tpu_custom_call.1
$region0: #{tpu_custom_call.1}
  #allocation0 [shape = 'u32[]', space=smem, size = 0x4, offset = 0x4, fixed_abs, tag = 'smem constant byte address 0x4 - core index']
  #allocation1 [shape = 'u32[144,128]{1,0:T(1,128)}', space=vmem, size = 0x12000, scoped, tag = 'internal scratch']
  %s0 = inlined_call_operand.vmem [shape: f32[8,64], index: 0, kind: input, shape index: {}]
  %s1 = inlined_call_operand.vmem [shape: bf16[64,32], index: 1, kind: input, shape index: {}]
  %s2 = inlined_call_operand.vmem [shape: f32[1,32], index: 2, kind: input, shape index: {}]
  %s3 = inlined_call_operand.vmem [shape: bf16[32,5], index: 3, kind: input, shape index: {}]
  %s4 = inlined_call_operand.vmem [shape: f32[1,5], index: 4, kind: input, shape index: {}]
  %s5 = inlined_call_operand.hbm [shape: f32[8,5], index: 5, kind: output, shape index: {}]
  %s6 = sld [smem:[#allocation0]]
  $region30: #{tpu_custom_call.1} parent=0
    _
  %s8 = ssub.s32 1, %s6
  %s9 = scalar_select 0, %s8, %s6
  $region1: #{tpu_custom_call.1} parent=0
    #allocation2 [shape = 'u8[4096]{0}', space=vmem, size = 0x1000, scoped, tag = 'output window, operand 0, single buffered']
    #allocation3 [shape = 's32[1]{0}', space=sflag, size = 0x4, scoped, tag = 'scoped memory for tpu_custom_call.1']
    %10 = vsyncpa [#allocation3], 0
    // Predicated region
    $region2: #{tpu_custom_call.1} parent=1 // pred_check
      _
    $region3: #{tpu_custom_call.1} parent=1 // pred_check_branch
      %12 = sbr.rel (0) target = $region5
    $region4: #{tpu_custom_call.1} parent=1 // pred_region
      _
    $region5: #{tpu_custom_call.1} parent=1 // pred_fallthru
      _
    // Predicated region
    $region6: #{tpu_custom_call.1} parent=1 // pred_check
      _
    $region7: #{tpu_custom_call.1} parent=1 // pred_check_branch
      %14 = sbr.rel (0) target = $region9
    $region8: #{tpu_custom_call.1} parent=1 // pred_region
      _
    $region9: #{tpu_custom_call.1} parent=1 // pred_fallthru
      _
    // Predicated region
    $region10: #{tpu_custom_call.1} parent=1 // pred_check
      _
    $region11: #{tpu_custom_call.1} parent=1 // pred_check_branch
      %16 = sbr.rel (0) target = $region13
    $region12: #{tpu_custom_call.1} parent=1 // pred_region
      _
    $region13: #{tpu_custom_call.1} parent=1 // pred_fallthru
      _
    // Predicated region
    $region14: #{tpu_custom_call.1} parent=1 // pred_check
      _
    $region15: #{tpu_custom_call.1} parent=1 // pred_check_branch
      %18 = sbr.rel (0) target = $region17
    $region16: #{tpu_custom_call.1} parent=1 // pred_region
      _
    $region17: #{tpu_custom_call.1} parent=1 // pred_fallthru
      _
    // Predicated region
    $region18: #{tpu_custom_call.1} parent=1 // pred_check
      _
    $region19: #{tpu_custom_call.1} parent=1 // pred_check_branch
      %20 = sbr.rel (0) target = $region21
    $region20: #{tpu_custom_call.1} parent=1 // pred_region
      _
    $region21: #{tpu_custom_call.1} parent=1 // pred_fallthru
      _
    %v22 = vld [vmem:[%s0] sm:$0xff]
    %v23 = vpack.c.bf16 %v22, %v22
    %v24 = vld [vmem:[%s1] sm:$0xf]
    %v25 = vld [vmem:[%s1 + $0x4] sm:$0xf]
    %v26 = vld [vmem:[%s1 + $0x8] sm:$0xf]
    %v27 = vld [vmem:[%s1 + $0xc] sm:$0xf]
    %v28 = vld [vmem:[%s1 + $0x10] sm:$0xf]
    %v29 = vld [vmem:[%s1 + $0x14] sm:$0xf]
    %v30 = vld [vmem:[%s1 + $0x18] sm:$0xf]
    %v31 = vld [vmem:[%s1 + $0x1c] sm:$0xf]
    %v32 = vld [vmem:[%s2] sm:$0x1]
    %v34 = vlaneseq
    %v35 = vshrl.u32 %v34, 7
    %v36 = vsub.s32 0, %v35
    %v37 = vrot.slane %v32, %v36
    %v47 = vunpack.c.l.b16 %v24
    %v48 = vunpack.c.l.b16 %v25
    %v49 = vunpack.c.l.b16 %v26
    %v50 = vunpack.c.l.b16 %v27
    %v51 = vunpack.c.l.b16 %v28
    %v52 = vunpack.c.l.b16 %v29
    %v53 = vunpack.c.l.b16 %v30
    %v54 = vunpack.c.l.b16 %v31
    %v55 = vpack.c.b16 %v48, %v47
    %v56 = vpack.c.b16 %v50, %v49
    %v57 = vpack.c.b16 %v52, %v51
    %v58 = vpack.c.b16 %v54, %v53
    %vm63 = vcmask 523264
    %v65 = vsel %vm63, %v23, 0
    %67 = vmatprep.subr.bf16.mxu0 0
    %68 = vmatpush1.bf16.msra.mxu0 0
    %69 = vmatprep.subr.bf16.mxu0 0
    %70 = vmatpush1.bf16.msra.mxu0 0
    %71 = vmatprep.subr.bf16.mxu0 0
    %72 = vmatpush1.bf16.msra.mxu0 0
    %73 = vmatprep.subr.bf16.mxu0 0
    %74 = vmatpush1.bf16.msra.mxu0 0
    %75 = vmatprep.subr.bf16.mxu0 0
    %76 = vmatpush1.bf16.msra.mxu0 %v58
    %77 = vmatprep.subr.bf16.mxu0 0
    %78 = vmatpush1.bf16.msra.mxu0 %v57
    %79 = vmatprep.subr.bf16.mxu0 0
    %80 = vmatpush1.bf16.msra.mxu0 %v56
    %81 = vmatprep.subr.bf16.mxu0 0
    %82 = vmatpush1.bf16.msra.mxu0 %v55
    %83 = vmatprep.subr.bf16.mxu0 0
    %84 = vmatpush2.bf16.msra.mxu0 0
    %85 = vmatprep.subr.bf16.mxu0 0
    %86 = vmatpush2.bf16.msra.mxu0 0
    %87 = vmatprep.subr.bf16.mxu0 0
    %88 = vmatpush2.bf16.msra.mxu0 0
    %89 = vmatprep.subr.bf16.mxu0 0
    %90 = vmatpush2.bf16.msra.mxu0 0
    %91 = vmatprep.subr.bf16.mxu0 0
    %92 = vmatpush2.bf16.msra.mxu0 0
    %93 = vmatprep.subr.bf16.mxu0 0
    %94 = vmatpush2.bf16.msra.mxu0 0
    %95 = vmatprep.subr.bf16.mxu0 0
    %96 = vmatpush2.bf16.msra.mxu0 0
    %97 = vmatprep.subr.bf16.mxu0 0
    %98 = vmatpush2.bf16.msra.mxu0 0
    %99 = vmatprep.mubr.bf16.mxu0 0
    %100 = vmatmul.mubr.bf16.gmra.mxu0 %v65
    %v101 = vpop.f32.mrf.mxu0
    %v102 = vadd.f32 %v37, %v101
    %v103 = vpop.f32.mrf.mxu0
    %v104 = vpop.f32.mrf.mxu0
    %v105 = vpop.f32.mrf.mxu0
    %106 = vdwg.mxu0
    %v107 = vmax.f32 %v102, 0.0
    %v108 = vpack.c.bf16 %v107, %v107
    %v109 = vld [vmem:[%s3] sm:$0xf]
    %v110 = vld [vmem:[%s3 + $0x4] sm:$0xf]
    %v111 = vld [vmem:[%s3 + $0x8] sm:$0xf]
    %v112 = vld [vmem:[%s3 + $0xc] sm:$0xf]
    %v113 = vld [vmem:[%s4] sm:$0x1]
    %v115 = vlaneseq
    %v116 = vshrl.u32 %v115, 7
    %v117 = vsub.s32 0, %v116
    %v118 = vrot.slane %v113, %v117
    %v124 = vunpack.c.l.b16 %v109
    %v125 = vunpack.c.l.b16 %v110
    %v126 = vunpack.c.l.b16 %v111
    %v127 = vunpack.c.l.b16 %v112
    %v128 = vpack.c.b16 %v125, %v124
    %v129 = vpack.c.b16 %v127, %v126
    %vm132 = vcmask 261120
    %v134 = vsel %vm132, %v108, 0
    %136 = vmatprep.subr.bf16.mxu0 0
    %137 = vmatpush1.bf16.msra.mxu0 0
    %138 = vmatprep.subr.bf16.mxu0 0
    %139 = vmatpush1.bf16.msra.mxu0 0
    %140 = vmatprep.subr.bf16.mxu0 0
    %141 = vmatpush1.bf16.msra.mxu0 0
    %142 = vmatprep.subr.bf16.mxu0 0
    %143 = vmatpush1.bf16.msra.mxu0 0
    %144 = vmatprep.subr.bf16.mxu0 0
    %145 = vmatpush1.bf16.msra.mxu0 0
    %146 = vmatprep.subr.bf16.mxu0 0
    %147 = vmatpush1.bf16.msra.mxu0 0
    %148 = vmatprep.subr.bf16.mxu0 0
    %149 = vmatpush1.bf16.msra.mxu0 %v129
    %150 = vmatprep.subr.bf16.mxu0 0
    %151 = vmatpush1.bf16.msra.mxu0 %v128
    %152 = vmatprep.subr.bf16.mxu0 0
    %153 = vmatpush2.bf16.msra.mxu0 0
    %154 = vmatprep.subr.bf16.mxu0 0
    %155 = vmatpush2.bf16.msra.mxu0 0
    %156 = vmatprep.subr.bf16.mxu0 0
    %157 = vmatpush2.bf16.msra.mxu0 0
    %158 = vmatprep.subr.bf16.mxu0 0
    %159 = vmatpush2.bf16.msra.mxu0 0
    %160 = vmatprep.subr.bf16.mxu0 0
    %161 = vmatpush2.bf16.msra.mxu0 0
    %162 = vmatprep.subr.bf16.mxu0 0
    %163 = vmatpush2.bf16.msra.mxu0 0
    %164 = vmatprep.subr.bf16.mxu0 0
    %165 = vmatpush2.bf16.msra.mxu0 0
    %166 = vmatprep.subr.bf16.mxu0 0
    %167 = vmatpush2.bf16.msra.mxu0 0
    %168 = vmatprep.mubr.bf16.mxu0 0
    %169 = vmatmul.mubr.bf16.gmra.mxu0 %v134
    %v170 = vpop.f32.mrf.mxu0
    %v171 = vadd.f32 %v118, %v170
    %v172 = vpop.f32.mrf.mxu0
    %v173 = vpop.f32.mrf.mxu0
    %v174 = vpop.f32.mrf.mxu0
    %175 = vdwg.mxu0
    %v176 = vlaneseq
    %v177 = vand.u32 %v176, 127
    %vm178 = vcmp.lt.s32.totalorder %v177, 4
    %v179 = vand.u32 2147483647, %v171
    %v180 = vsel %vm178, %v179, %v171
    %vm181 = vcmask 39936
    %182 = vst.msk [vmem:[#allocation2] sm:$0xff] %vm181, %v180
    // Predicated region
    $region22: #{tpu_custom_call.1} parent=1 // pred_check
      _
    $region23: #{tpu_custom_call.1} parent=1 // pred_check_branch
      %184 = sbr.rel (0) target = $region25
    $region24: #{tpu_custom_call.1} parent=1 // pred_region
      %s186 = ssub.s32 128, 128
      %187 = vsyncadd [#allocation3], %s186
      %s189 = sshll.u32 [#allocation2], 4
      %s190 = int_to_ptr.vmem [resolvable:$true] %s189
      %192 = dma.vmem_to_hbm [thread:$0]  %s190, 128, %s5, [#allocation3]
    $region25: #{tpu_custom_call.1} parent=1 // pred_fallthru
      _
    // Predicated region
    $region26: #{tpu_custom_call.1} parent=1 // pred_check
      _
    $region27: #{tpu_custom_call.1} parent=1 // pred_check_branch
      %194 = sbr.rel (0) target = $region29
    $region28: #{tpu_custom_call.1} parent=1 // pred_region
      %195 = dma.done [#allocation3], 128
    $region29: #{tpu_custom_call.1} parent=1 // pred_fallthru
      _
    %196 = vsyncpa [#allocation3], 1

</llo_original>
